<compile_context>
chip_gen: v5e
topology: v5e:2x2
jax: 0.10.0
libtpu: 0.0.40
codegen_flags: <defaults>
</compile_context>

<pallas_src>
import numpy as np
import jax
import jax.numpy as jnp
from jax import lax
from jax.experimental import pallas as pl
from jax.experimental.pallas import tpu as pltpu

# ----------------------------- configuration -----------------------------
PAD, UNK, SOS, EOS = 0, 1, 2, 3
VOCAB_SIZE = 20
EMBED_DIM = 16          # c_emb.embedding.dim
LSTM_DIM = 16           # c_emb.lstm.dim
SEQ_IN_SIZE = 2 * LSTM_DIM
LENGTH_EMBED_DIM = 8
NUM_BUCKETS = 9
CAT_DIM = EMBED_DIM + SEQ_IN_SIZE      # 48: concat([emb, hid], -1)

BATCH = 2
SEQ_LENGTHS = [6, 4]            # per-example token counts (w/o SOS/EOS)
MAX_SEQ_LEN = max(SEQ_LENGTHS)  # 6
P = MAX_SEQ_LEN + 2             # padded length incl SOS/EOS

# All span features enabled -> span_embedding_dim:
#   inside_token (2E) + inside_hidden (2H2) + stern (H2) + avg_token (E)
#   + avg_hidden (H2) + att_token (E) + att_hidden (H2) + length (LD)
SPAN_DIM = (2 * EMBED_DIM + 2 * SEQ_IN_SIZE + SEQ_IN_SIZE + EMBED_DIM
            + SEQ_IN_SIZE + EMBED_DIM + SEQ_IN_SIZE + LENGTH_EMBED_DIM)


def length_bucket(n):
    buckets = {0: 999}
    for i in range(1, 5):
        buckets[i] = i - 1
    for i in range(5, 8):
        buckets[i] = 4
    for i in range(8, 16):
        buckets[i] = 5
    for i in range(16, 32):
        buckets[i] = 6
    for i in range(32, 64):
        buckets[i] = 7
    return buckets.get(n, NUM_BUCKETS - 1)


def all_spans(seq_len):
    spans = []
    for span_size in range(seq_len):
        for start in range(seq_len - span_size):
            spans.append([start, start + span_size + 1])
    return spans


def round_up(n, m):
    return ((n + m - 1) // m) * m


# ----------------------------- plain-JAX LSTM (glue) -----------------------------
# TODO(synk): the LSTM recurrence is inherently sequential; no clean Pallas tiling,
#             so embedding lookup + BiLSTM stay in plain JAX (lax.scan).
def lstm_cell_step(params, h, c, x):
    w_ih, w_hh, b_ih, b_hh = params
    gates = x @ w_ih.T + h @ w_hh.T + b_ih + b_hh
    i, f, g, o = jnp.split(gates, 4, axis=-1)
    i, f, o = jax.nn.sigmoid(i), jax.nn.sigmoid(f), jax.nn.sigmoid(o)
    g = jnp.tanh(g)
    c_new = f * c + i * g
    h_new = o * jnp.tanh(c_new)
    return h_new, c_new


def bilstm(emb, lengths_pp, fwd_params, bwd_params):
    """emb: (B, P, E); lengths_pp: (B,) incl. SOS/EOS.  Packed-sequence semantics:
    outputs beyond each length are zero; backward pass starts at length-1."""
    B = emb.shape[0]

    def run(params, time_indices):
        def step(carry, t):
            h, c = carry
            x_t = emb[:, t, :]
            h_new, c_new = lstm_cell_step(params, h, c, x_t)
            valid = (t < lengths_pp)[:, None]
            h = jnp.where(valid, h_new, h)
            c = jnp.where(valid, c_new, c)
            out_t = jnp.where(valid, h, 0.0)
            return (h, c), out_t

        init = (jnp.zeros((B, LSTM_DIM), jnp.float32),
                jnp.zeros((B, LSTM_DIM), jnp.float32))
        _, outs = lax.scan(step, init, time_indices)  # (T, B, H)
        return outs

    fwd_out = run(fwd_params, jnp.arange(P))                       # (P, B, H)
    bwd_out = run(bwd_params, jnp.arange(P - 1, -1, -1))[::-1]     # (P, B, H)
    out = jnp.concatenate([fwd_out, bwd_out], axis=-1)             # (P, B, 2H)
    return jnp.transpose(out, (1, 0, 2))                           # (B, P, 2H)


# ----------------------------- Pallas kernel -----------------------------
def span_kernel(lhs_ref, mask_ref, logit_ref, rhs_ref, out_ref, lhs_scr):
    """Single invocation, whole batch, one MXU matmul, one output slab.

    lhs_ref:   (R_pad, P)       stacked static gather rows (zero-padded)
    mask_ref:  (A_pad, P)       batch-tiled span inclusion mask (pad rows safe)
    logit_ref: (A_pad, P)       per-row attention logits (row r -> batch r//S)
    rhs_ref:   (P, B*CAT)       column-stacked concat([emb, hid]) per batch
    out_ref:   (R_pad+A_pad, B*CAT)
    lhs_scr:   (R_pad+A_pad, P) VMEM scratch used to assemble the fused LHS
    """
    r_pad = lhs_ref.shape[0]

    # Batch-vectorized masked softmax over the sequence axis.
    att = jnp.where(mask_ref[...] > 0.0, logit_ref[...], -jnp.inf)     # (A_pad, P)
    p = jnp.exp(att - jnp.max(att, axis=-1, keepdims=True))
    sm = p * pl.reciprocal(jnp.sum(p, axis=-1, keepdims=True), approx=False)

    # Assemble fused LHS: [static gathers ; softmax rows] and do ONE matmul.
    lhs_scr[:r_pad, :] = lhs_ref[...]
    lhs_scr[r_pad:, :] = sm
    out_ref[...] = jnp.dot(lhs_scr[...], rhs_ref[...],
                           preferred_element_type=jnp.float32)


def span_representation(embedded_tokens, lstm_out, w_att, b_att,
                        stacked_lhs, mask_rows, sel_rows, len_emb):
    """Wrapper: hoisted prep (XLA) -> single Pallas call -> XLA reassembly."""
    B, P_, _ = embedded_tokens.shape
    S = len_emb.shape[0]
    R_pad = stacked_lhs.shape[0]
    A_pad = mask_rows.shape[0]
    M_total = R_pad + A_pad

    # Hoisted out of the kernel: feature concat, attention FFNN, row expansion.
    cat = jnp.concatenate([embedded_tokens, lstm_out], axis=-1)          # (B,P,CAT)
    CAT = cat.shape[-1]
    rhs = jnp.transpose(cat, (1, 0, 2)).reshape(P_, B * CAT)             # (P, B*CAT)
    logits = (lstm_out @ w_att)[..., 0] + b_att[0, 0]                    # (B, P)
    logit_rows = sel_rows @ logits                                       # (A_pad, P)

    vmem = pl.BlockSpec(memory_space=pltpu.MemorySpace.VMEM)
    out = pl.pallas_call(
        span_kernel,
        out_shape=jax.ShapeDtypeStruct((M_total, B * CAT), jnp.float32),
        in_specs=[vmem, vmem, vmem, vmem],
        out_specs=vmem,
        scratch_shapes=[pltpu.VMEM((M_total, P_), jnp.float32)],
    )(stacked_lhs, mask_rows, logit_rows, rhs)

    # Reassemble features in the original order (cheap XLA slicing / concat).
    out3 = jnp.transpose(out.reshape(M_total, B, CAT), (1, 0, 2))        # (B, M, CAT)
    E, H = EMBED_DIM, LSTM_DIM
    g0 = out3[:, 0 * S:1 * S]    # oh_s1           @ [emb, hid]
    g1 = out3[:, 1 * S:2 * S]    # oh_e            @ [emb, hid]
    g2 = out3[:, 2 * S:3 * S]    # (oh_e - oh_s)   @ [emb, hid]
    g3 = out3[:, 3 * S:4 * S]    # (oh_s1 - oh_e1) @ [emb, hid]
    g4 = out3[:, 4 * S:5 * S]    # avg_w           @ [emb, hid]  (contiguous avg feats)
    # per-batch diagonal blocks of the attention rows
    att = jnp.stack([out3[b, R_pad + b * S: R_pad + (b + 1) * S] for b in range(B)],
                    axis=0)                                              # (B, S, CAT)
    len_b = jnp.broadcast_to(len_emb[None], (B, S, len_emb.shape[-1]))

    return jnp.concatenate(
        [g0[..., :E], g1[..., :E],            # start_token, end_token
         g0[..., E:], g1[..., E:],            # start_hidden, end_hidden
         g2[..., E:E + H], g3[..., E + H:],   # stern_fwd, stern_bwd
         g4,                                  # avg_token | avg_hidden (contiguous)
         att,                                 # att_token | att_hidden (contiguous)
         len_b], axis=-1)


span_representation = jax.jit(span_representation)


# ----------------------------- pure-JAX reference -----------------------------
def reference_repr(embedded_tokens, lstm_out, w_att, b_att,
                   mask, oh_s, oh_s1, oh_e, oh_e1, len_emb):
    aw = lstm_out @ w_att + b_att[0, 0]                     # (B, P, 1)
    emb, hid = embedded_tokens, lstm_out
    start_token = jnp.einsum('sp,bpe->bse', oh_s1, emb)
    end_token = jnp.einsum('sp,bpe->bse', oh_e, emb)
    start_hidden = jnp.einsum('sp,bph->bsh', oh_s1, hid)
    end_hidden = jnp.einsum('sp,bph->bsh', oh_e, hid)
    fwd_h, bwd_h = hid[..., :LSTM_DIM], hid[..., LSTM_DIM:]
    stern_fwd = (jnp.einsum('sp,bph->bsh', oh_e, fwd_h)
                 - jnp.einsum('sp,bph->bsh', oh_s, fwd_h))
    stern_bwd = (jnp.einsum('sp,bph->bsh', oh_s1, bwd_h)
                 - jnp.einsum('sp,bph->bsh', oh_e1, bwd_h))
    avg_w = mask / jnp.sum(mask, axis=1, keepdims=True)
    avg_token = jnp.einsum('sp,bpe->bse', avg_w, emb)
    avg_hidden = jnp.einsum('sp,bph->bsh', avg_w, hid)
    att = mask[None] * jnp.transpose(aw, (0, 2, 1))
    att = jnp.where(mask[None] == 0.0, -jnp.inf, att)
    sm = jax.nn.softmax(att, axis=2)
    att_token = jnp.einsum('bsp,bpe->bse', sm, emb)
    att_hidden = jnp.einsum('bsp,bph->bsh', sm, hid)
    B = emb.shape[0]
    len_b = jnp.broadcast_to(len_emb[None], (B,) + len_emb.shape)
    return jnp.concatenate(
        [start_token, end_token, start_hidden, end_hidden,
         stern_fwd, stern_bwd, avg_token, avg_hidden,
         att_token, att_hidden, len_b], axis=-1)


# ----------------------------- main -----------------------------
if __name__ == "__main__":
    key = jax.random.PRNGKey(0)
    keys = jax.random.split(key, 12)

    # Deterministic parameters (synthetic, not a checkpoint).
    token_emb_table = 0.1 * jax.random.normal(keys[0], (VOCAB_SIZE, EMBED_DIM), jnp.float32)
    w_ih_f = 0.1 * jax.random.normal(keys[1], (4 * LSTM_DIM, EMBED_DIM), jnp.float32)
    w_hh_f = 0.1 * jax.random.normal(keys[2], (4 * LSTM_DIM, LSTM_DIM), jnp.float32)
    b_ih_f = 0.1 * jax.random.normal(keys[3], (4 * LSTM_DIM,), jnp.float32)
    b_hh_f = 0.1 * jax.random.normal(keys[4], (4 * LSTM_DIM,), jnp.float32)
    w_ih_b = 0.1 * jax.random.normal(keys[5], (4 * LSTM_DIM, EMBED_DIM), jnp.float32)
    w_hh_b = 0.1 * jax.random.normal(keys[6], (4 * LSTM_DIM, LSTM_DIM), jnp.float32)
    b_ih_b = 0.1 * jax.random.normal(keys[7], (4 * LSTM_DIM,), jnp.float32)
    b_hh_b = 0.1 * jax.random.normal(keys[8], (4 * LSTM_DIM,), jnp.float32)
    w_att = 0.1 * jax.random.normal(keys[9], (SEQ_IN_SIZE, 1), jnp.float32)
    b_att = 0.1 * jax.random.normal(keys[10], (1, 1), jnp.float32)
    length_emb_table = 0.1 * jax.random.normal(keys[11], (NUM_BUCKETS, LENGTH_EMBED_DIM), jnp.float32)

    # Synthetic batch of token indices (word dropout off / eval mode).
    rng = np.random.RandomState(0)
    token_ids = np.zeros((BATCH, P), dtype=np.int32)  # pad with PAD=0
    for b, L in enumerate(SEQ_LENGTHS):
        toks = rng.randint(4, VOCAB_SIZE, size=L)
        token_ids[b, :L + 2] = np.concatenate([[SOS], toks, [EOS]])
    token_ids = jnp.asarray(token_ids)
    seq_lengths = jnp.asarray(SEQ_LENGTHS, jnp.int32)

    # embed_stuff: embedding lookup + BiLSTM (glue, plain JAX)
    embedded_tokens = token_emb_table[token_ids]                       # (B, P, E)
    lstm_out = bilstm(embedded_tokens, seq_lengths + 2,
                      (w_ih_f, w_hh_f, b_ih_f, b_hh_f),
                      (w_ih_b, w_hh_b, b_ih_b, b_hh_b))                # (B, P, 2H)

    # span bookkeeping (static, Python/NumPy on host)
    spans = all_spans(MAX_SEQ_LEN)
    S = len(spans)
    mask_np = np.zeros((S, P), np.float32)
    oh_s_np = np.zeros((S, P), np.float32)
    oh_s1_np = np.zeros((S, P), np.float32)
    oh_e_np = np.zeros((S, P), np.float32)
    oh_e1_np = np.zeros((S, P), np.float32)
    buckets = np.zeros((S,), np.int32)
    for i, (s, e) in enumerate(spans):
        mask_np[i, s + 1:e + 1] = 1.0
        oh_s_np[i, s] = 1.0
        oh_s1_np[i, s + 1] = 1.0
        oh_e_np[i, e] = 1.0
        oh_e1_np[i, e + 1] = 1.0
        buckets[i] = length_bucket(e - s)

    # Static stacked-gather LHS (fused MXU matmul input), rows padded to /8.
    avg_w_np = mask_np / mask_np.sum(axis=1, keepdims=True)
    d_fwd_np = oh_e_np - oh_s_np              # stern forward diff rows
    d_bwd_np = oh_s1_np - oh_e1_np            # stern backward diff rows
    stacked_np = np.concatenate(
        [oh_s1_np, oh_e_np, d_fwd_np, d_bwd_np, avg_w_np], axis=0)     # (5S, P)
    R_pad = round_up(stacked_np.shape[0], 8)
    if R_pad > stacked_np.shape[0]:
        stacked_np = np.concatenate(
            [stacked_np, np.zeros((R_pad - stacked_np.shape[0], P), np.float32)], axis=0)

    # Batch-tiled attention mask rows (A_pad, P) and batch-selector (A_pad, B).
    A = BATCH * S
    A_pad = round_up(A, 8)
    mask_rows_np = np.zeros((A_pad, P), np.float32)
    mask_rows_np[:A] = np.tile(mask_np, (BATCH, 1))
    mask_rows_np[A:, 0] = 1.0                 # keep softmax of pad rows finite
    sel_rows_np = np.zeros((A_pad, BATCH), np.float32)
    for b in range(BATCH):
        sel_rows_np[b * S:(b + 1) * S, b] = 1.0

    mask = jnp.asarray(mask_np)
    stacked_lhs = jnp.asarray(stacked_np)
    mask_rows = jnp.asarray(mask_rows_np)
    sel_rows = jnp.asarray(sel_rows_np)
    oh_s, oh_s1 = jnp.asarray(oh_s_np), jnp.asarray(oh_s1_np)
    oh_e, oh_e1 = jnp.asarray(oh_e_np), jnp.asarray(oh_e1_np)
    len_emb = length_emb_table[jnp.asarray(buckets)]                   # (S, LD)

    # Pallas kernel: fused span gathers + attention softmax features
    rep = span_representation(embedded_tokens, lstm_out, w_att, b_att,
                              stacked_lhs, mask_rows, sel_rows, len_emb)
    rep = jax.block_until_ready(rep)

    ref = reference_repr(embedded_tokens, lstm_out, w_att, b_att,
                         mask, oh_s, oh_s1, oh_e, oh_e1, len_emb)
    assert rep.shape == (BATCH, S, SPAN_DIM), rep.shape
    np.testing.assert_allclose(np.asarray(rep), np.asarray(ref), rtol=1e-5, atol=1e-5)
    print("KERNEL_OK")
</pallas_src>

<mosaic_0001>
module attributes {stable_mosaic.version = 11 : i64} {
  func.func @span_kernel(%arg0: memref<112x8xf32, #tpu.memory_space<vmem>>, %arg1: memref<48x8xf32, #tpu.memory_space<vmem>>, %arg2: memref<48x8xf32, #tpu.memory_space<vmem>>, %arg3: memref<8x96xf32, #tpu.memory_space<vmem>>, %arg4: memref<160x96xf32, #tpu.memory_space<vmem>>, %arg5: memref<160x8xf32, #tpu.memory_space<vmem>>) attributes {dimension_semantics = [], scalar_prefetch = 0 : i64, scratch_operands = 1 : i64, tpu.core_type = #tpu.core_type<tc>} {
    %c0 = arith.constant 0 : index
    %c0_0 = arith.constant 0 : index
    %0 = vector.load %arg1[%c0, %c0_0] : memref<48x8xf32, #tpu.memory_space<vmem>>, vector<48x8xf32>
    %cst = arith.constant 0.000000e+00 : f32
    %1 = vector.broadcast %cst : f32 to vector<48x8xf32>
    %2 = arith.cmpf ogt, %0, %1 : vector<48x8xf32>
    %c0_1 = arith.constant 0 : index
    %c0_2 = arith.constant 0 : index
    %3 = vector.load %arg2[%c0_1, %c0_2] : memref<48x8xf32, #tpu.memory_space<vmem>>, vector<48x8xf32>
    %cst_3 = arith.constant 0xFF800000 : f32
    %4 = vector.broadcast %cst_3 : f32 to vector<48x8xf32>
    %5 = arith.select %2, %3, %4 : vector<48x8xi1>, vector<48x8xf32>
    %cst_4 = arith.constant dense<0xFF800000> : vector<48xf32>
    %6 = vector.multi_reduction <maximumf>, %5, %cst_4 [1] : vector<48x8xf32> to vector<48xf32>
    %7 = vector.shape_cast %6 : vector<48xf32> to vector<48x1xf32>
    %8 = vector.broadcast %7 : vector<48x1xf32> to vector<48x8xf32>
    %9 = arith.subf %5, %8 : vector<48x8xf32>
    %10 = math.exp %9 : vector<48x8xf32>
    %cst_5 = arith.constant dense<0.000000e+00> : vector<48xf32>
    %11 = vector.multi_reduction <add>, %10, %cst_5 [1] : vector<48x8xf32> to vector<48xf32>
    %12 = vector.shape_cast %11 : vector<48xf32> to vector<48x1xf32>
    %13 = tpu.reciprocal %12 : vector<48x1xf32> -> vector<48x1xf32>
    %14 = vector.broadcast %13 : vector<48x1xf32> to vector<48x8xf32>
    %15 = arith.mulf %10, %14 : vector<48x8xf32>
    %c0_6 = arith.constant 0 : index
    %c0_7 = arith.constant 0 : index
    %16 = vector.load %arg0[%c0_6, %c0_7] : memref<112x8xf32, #tpu.memory_space<vmem>>, vector<112x8xf32>
    %c0_8 = arith.constant 0 : index
    %c0_9 = arith.constant 0 : index
    %17 = vector.load %arg5[%c0_8, %c0_9] : memref<160x8xf32, #tpu.memory_space<vmem>>, vector<112x8xf32>
    tpu.vector_store %arg5[%c0_8, %c0_9], %16 {strides = array<i32>} : memref<160x8xf32, #tpu.memory_space<vmem>>, vector<112x8xf32>,
    %c112 = arith.constant 112 : index
    %c0_10 = arith.constant 0 : index
    %18 = vector.load %arg5[%c112, %c0_10] : memref<160x8xf32, #tpu.memory_space<vmem>>, vector<48x8xf32>
    tpu.vector_store %arg5[%c112, %c0_10], %15 {strides = array<i32>} : memref<160x8xf32, #tpu.memory_space<vmem>>, vector<48x8xf32>,
    %c0_11 = arith.constant 0 : index
    %c0_12 = arith.constant 0 : index
    %19 = vector.load %arg5[%c0_11, %c0_12] : memref<160x8xf32, #tpu.memory_space<vmem>>, vector<160x8xf32>
    %c0_13 = arith.constant 0 : index
    %c0_14 = arith.constant 0 : index
    %20 = vector.load %arg3[%c0_13, %c0_14] : memref<8x96xf32, #tpu.memory_space<vmem>>, vector<8x96xf32>
    %cst_15 = arith.constant dense<0.000000e+00> : vector<160x96xf32>
    %21 = tpu.matmul %19, %20, %cst_15 {dimension_numbers = #tpu.dot_dimension_numbers<[1], [0], [0], [1], [0, 0, 1, 1], [], []>} : vector<160x8xf32>, vector<8x96xf32>, vector<160x96xf32> -> vector<160x96xf32>
    %c0_16 = arith.constant 0 : index
    %c0_17 = arith.constant 0 : index
    %22 = vector.load %arg4[%c0_16, %c0_17] : memref<160x96xf32, #tpu.memory_space<vmem>>, vector<160x96xf32>
    tpu.vector_store %arg4[%c0_16, %c0_17], %21 {strides = array<i32>} : memref<160x96xf32, #tpu.memory_space<vmem>>, vector<160x96xf32>,
    return
  }
}

</mosaic_0001>

<llo_original>
// kernel: span_representation.1
$region0: #{span_representation.1}
  #allocation0 [shape = 'u32[]', space=smem, size = 0x4, offset = 0x4, fixed_abs, tag = 'smem constant byte address 0x4 - core index']
  #allocation1 [shape = 'u32[72,128]{1,0:T(1,128)}', space=vmem, size = 0x9000, scoped, tag = 'internal scratch']
  #allocation2 [shape = 'f32[160,8]{1,0:T(8,128)}', space=vmem, size = 0x14000, scoped, tag = 'scratch operand']
  %s0 = inlined_call_operand.vmem [shape: f32[112,8], index: 0, kind: input, shape index: {}]
  %s1 = inlined_call_operand.vmem [shape: f32[48,8], index: 1, kind: input, shape index: {}]
  %s2 = inlined_call_operand.vmem [shape: f32[48,8], index: 2, kind: input, shape index: {}]
  %s3 = inlined_call_operand.vmem [shape: f32[8,96], index: 3, kind: input, shape index: {}]
  %s4 = inlined_call_operand.vmem [shape: f32[160,96], index: 4, kind: output, shape index: {}]
  %s5 = sld [smem:[#allocation0]]
  $region26: #{span_representation.1} parent=0
    _
  %s7 = ssub.s32 1, %s5
  %s8 = scalar_select 0, %s7, %s5
  // Predicated region
  $region2: #{span_representation.1} parent=0 // pred_check
    _
  $region3: #{span_representation.1} parent=0 // pred_check_branch
    %10 = sbr.rel (0) target = $region5
  $region4: #{span_representation.1} parent=0 // pred_region
    _
  $region5: #{span_representation.1} parent=0 // pred_fallthru
    _
  // Predicated region
  $region6: #{span_representation.1} parent=0 // pred_check
    _
  $region7: #{span_representation.1} parent=0 // pred_check_branch
    %12 = sbr.rel (0) target = $region9
  $region8: #{span_representation.1} parent=0 // pred_region
    _
  $region9: #{span_representation.1} parent=0 // pred_fallthru
    _
  // Predicated region
  $region10: #{span_representation.1} parent=0 // pred_check
    _
  $region11: #{span_representation.1} parent=0 // pred_check_branch
    %14 = sbr.rel (0) target = $region13
  $region12: #{span_representation.1} parent=0 // pred_region
    _
  $region13: #{span_representation.1} parent=0 // pred_fallthru
    _
  // Predicated region
  $region14: #{span_representation.1} parent=0 // pred_check
    _
  $region15: #{span_representation.1} parent=0 // pred_check_branch
    %16 = sbr.rel (0) target = $region17
  $region16: #{span_representation.1} parent=0 // pred_region
    _
  $region17: #{span_representation.1} parent=0 // pred_fallthru
    _
  %v17 = vld [vmem:[%s1] sm:$0xff]
  %v18 = vld [vmem:[%s1 + $0x8] sm:$0xff]
  %v19 = vld [vmem:[%s1 + $0x10] sm:$0xff]
  %v20 = vld [vmem:[%s1 + $0x18] sm:$0xff]
  %v21 = vld [vmem:[%s1 + $0x20] sm:$0xff]
  %v22 = vld [vmem:[%s1 + $0x28] sm:$0xff]
  %vm23 = vcmp.gt.f32.partialorder %v17, 0.0
  %vm24 = vcmp.gt.f32.partialorder %v18, 0.0
  %vm25 = vcmp.gt.f32.partialorder %v19, 0.0
  %vm26 = vcmp.gt.f32.partialorder %v20, 0.0
  %vm27 = vcmp.gt.f32.partialorder %v21, 0.0
  %vm28 = vcmp.gt.f32.partialorder %v22, 0.0
  %v29 = vld [vmem:[%s2] sm:$0xff]
  %v30 = vld [vmem:[%s2 + $0x8] sm:$0xff]
  %v31 = vld [vmem:[%s2 + $0x10] sm:$0xff]
  %v32 = vld [vmem:[%s2 + $0x18] sm:$0xff]
  %v33 = vld [vmem:[%s2 + $0x20] sm:$0xff]
  %v34 = vld [vmem:[%s2 + $0x28] sm:$0xff]
  %v35 = vsel %vm23, %v29, -inf
  %v36 = vsel %vm24, %v30, -inf
  %v37 = vsel %vm25, %v31, -inf
  %v38 = vsel %vm26, %v32, -inf
  %v39 = vsel %vm27, %v33, -inf
  %v40 = vsel %vm28, %v34, -inf
  %vm41 = vcmask 64512
  %v42 = vsel %vm41, %v35, -inf
  %43 = vmax.xlane.f32.xlu0 %v42
  %v44 = vpop.xlane.xlu0 %43
  %v45 = vsel %vm41, %v36, -inf
  %46 = vmax.xlane.f32.xlu0 %v45
  %v47 = vpop.xlane.xlu0 %46
  %v48 = vsel %vm41, %v37, -inf
  %49 = vmax.xlane.f32.xlu0 %v48
  %v50 = vpop.xlane.xlu0 %49
  %v51 = vsel %vm41, %v38, -inf
  %52 = vmax.xlane.f32.xlu0 %v51
  %v53 = vpop.xlane.xlu0 %52
  %v54 = vsel %vm41, %v39, -inf
  %55 = vmax.xlane.f32.xlu0 %v54
  %v56 = vpop.xlane.xlu0 %55
  %v57 = vsel %vm41, %v40, -inf
  %58 = vmax.xlane.f32.xlu0 %v57
  %v59 = vpop.xlane.xlu0 %58
  %v60 = vsub.f32 %v35, %v44
  %v61 = vsub.f32 %v36, %v47
  %v62 = vsub.f32 %v37, %v50
  %v63 = vsub.f32 %v38, %v53
  %v64 = vsub.f32 %v39, %v56
  %v65 = vsub.f32 %v40, %v59
  %v66 = vmul.f32 %v60, 1.442695
  %v67 = vpow.pop %v66
  %v68 = vmul.f32 %v61, 1.442695
  %v69 = vpow.pop %v68
  %v70 = vmul.f32 %v62, 1.442695
  %v71 = vpow.pop %v70
  %v72 = vmul.f32 %v63, 1.442695
  %v73 = vpow.pop %v72
  %v74 = vmul.f32 %v64, 1.442695
  %v75 = vpow.pop %v74
  %v76 = vmul.f32 %v65, 1.442695
  %v77 = vpow.pop %v76
  %v78 = vsel %vm41, %v67, 0.0
  %79 = vadd.xlane.f32.xlu0 %v78
  %v80 = vpop.xlane.xlu0 %79
  %v81 = vsel %vm41, %v69, 0.0
  %82 = vadd.xlane.f32.xlu0 %v81
  %v83 = vpop.xlane.xlu0 %82
  %v84 = vsel %vm41, %v71, 0.0
  %85 = vadd.xlane.f32.xlu0 %v84
  %v86 = vpop.xlane.xlu0 %85
  %v87 = vsel %vm41, %v73, 0.0
  %88 = vadd.xlane.f32.xlu0 %v87
  %v89 = vpop.xlane.xlu0 %88
  %v90 = vsel %vm41, %v75, 0.0
  %91 = vadd.xlane.f32.xlu0 %v90
  %v92 = vpop.xlane.xlu0 %91
  %v93 = vsel %vm41, %v77, 0.0
  %94 = vadd.xlane.f32.xlu0 %v93
  %v95 = vpop.xlane.xlu0 %94
  %v96 = vrcp.pop %v80
  %v97 = vmul.f32 %v80, %v96
  %v98 = vsub.f32 1.0, %v97
  %v99 = vmul.f32 %v96, %v98
  %v100 = vadd.f32 %v96, %v99
  %vm101 = vweird.f32 %v80
  %vm102 = vweird.f32 %v96
  %vm103 = vmor %vm101, %vm102
  %v104 = vsel %vm103, %v96, %v100
  %v105 = vand.u32 2147483647, %v80
  %vm106 = vcmp.eq.f32.partialorder %v105, 8.507059e+37
  %v107 = vand.u32 %v80, 2147483648
  %v108 = vor.u32 1.1754944e-38, %v107
  %v109 = vsel %vm106, %v108, %v104
  %v110 = vrcp.pop %v83
  %v111 = vmul.f32 %v83, %v110
  %v112 = vsub.f32 1.0, %v111
  %v113 = vmul.f32 %v110, %v112
  %v114 = vadd.f32 %v110, %v113
  %vm115 = vweird.f32 %v83
  %vm116 = vweird.f32 %v110
  %vm117 = vmor %vm115, %vm116
  %v118 = vsel %vm117, %v110, %v114
  %v119 = vand.u32 2147483647, %v83
  %vm120 = vcmp.eq.f32.partialorder %v119, 8.507059e+37
  %v121 = vand.u32 %v83, 2147483648
  %v122 = vor.u32 1.1754944e-38, %v121
  %v123 = vsel %vm120, %v122, %v118
  %v124 = vrcp.pop %v86
  %v125 = vmul.f32 %v86, %v124
  %v126 = vsub.f32 1.0, %v125
  %v127 = vmul.f32 %v124, %v126
  %v128 = vadd.f32 %v124, %v127
  %vm129 = vweird.f32 %v86
  %vm130 = vweird.f32 %v124
  %vm131 = vmor %vm129, %vm130
  %v132 = vsel %vm131, %v124, %v128
  %v133 = vand.u32 2147483647, %v86
  %vm134 = vcmp.eq.f32.partialorder %v133, 8.507059e+37
  %v135 = vand.u32 %v86, 2147483648
  %v136 = vor.u32 1.1754944e-38, %v135
  %v137 = vsel %vm134, %v136, %v132
  %v138 = vrcp.pop %v89
  %v139 = vmul.f32 %v89, %v138
  %v140 = vsub.f32 1.0, %v139
  %v141 = vmul.f32 %v138, %v140
  %v142 = vadd.f32 %v138, %v141
  %vm143 = vweird.f32 %v89
  %vm144 = vweird.f32 %v138
  %vm145 = vmor %vm143, %vm144
  %v146 = vsel %vm145, %v138, %v142
  %v147 = vand.u32 2147483647, %v89
  %vm148 = vcmp.eq.f32.partialorder %v147, 8.507059e+37
  %v149 = vand.u32 %v89, 2147483648
  %v150 = vor.u32 1.1754944e-38, %v149
  %v151 = vsel %vm148, %v150, %v146
  %v152 = vrcp.pop %v92
  %v153 = vmul.f32 %v92, %v152
  %v154 = vsub.f32 1.0, %v153
  %v155 = vmul.f32 %v152, %v154
  %v156 = vadd.f32 %v152, %v155
  %vm157 = vweird.f32 %v92
  %vm158 = vweird.f32 %v152
  %vm159 = vmor %vm157, %vm158
  %v160 = vsel %vm159, %v152, %v156
  %v161 = vand.u32 2147483647, %v92
  %vm162 = vcmp.eq.f32.partialorder %v161, 8.507059e+37
  %v163 = vand.u32 %v92, 2147483648
  %v164 = vor.u32 1.1754944e-38, %v163
  %v165 = vsel %vm162, %v164, %v160
  %v166 = vrcp.pop %v95
  %v167 = vmul.f32 %v95, %v166
  %v168 = vsub.f32 1.0, %v167
  %v169 = vmul.f32 %v166, %v168
  %v170 = vadd.f32 %v166, %v169
  %vm171 = vweird.f32 %v95
  %vm172 = vweird.f32 %v166
  %vm173 = vmor %vm171, %vm172
  %v174 = vsel %vm173, %v166, %v170
  %v175 = vand.u32 2147483647, %v95
  %vm176 = vcmp.eq.f32.partialorder %v175, 8.507059e+37
  %v177 = vand.u32 %v95, 2147483648
  %v178 = vor.u32 1.1754944e-38, %v177
  %v179 = vsel %vm176, %v178, %v174
  %v180 = vmul.f32 %v67, %v109
  %v181 = vmul.f32 %v69, %v123
  %v182 = vmul.f32 %v71, %v137
  %v183 = vmul.f32 %v73, %v151
  %v184 = vmul.f32 %v75, %v165
  %v185 = vmul.f32 %v77, %v179
  %v186 = vld [vmem:[%s0] sm:$0xff]
  %v187 = vld [vmem:[%s0 + $0x8] sm:$0xff]
  %v188 = vld [vmem:[%s0 + $0x10] sm:$0xff]
  %v189 = vld [vmem:[%s0 + $0x18] sm:$0xff]
  %v190 = vld [vmem:[%s0 + $0x20] sm:$0xff]
  %v191 = vld [vmem:[%s0 + $0x28] sm:$0xff]
  %v192 = vld [vmem:[%s0 + $0x30] sm:$0xff]
  %v193 = vld [vmem:[%s0 + $0x38] sm:$0xff]
  %v194 = vld [vmem:[%s0 + $0x40] sm:$0xff]
  %v195 = vld [vmem:[%s0 + $0x48] sm:$0xff]
  %v196 = vld [vmem:[%s0 + $0x50] sm:$0xff]
  %v197 = vld [vmem:[%s0 + $0x58] sm:$0xff]
  %v198 = vld [vmem:[%s0 + $0x60] sm:$0xff]
  %v199 = vld [vmem:[%s0 + $0x68] sm:$0xff]
  %200 = vst.msk [vmem:[#allocation2] sm:$0xff] %vm41, %v186
  %201 = vst.msk [vmem:[#allocation2 + $0x8] sm:$0xff] %vm41, %v187
  %202 = vst.msk [vmem:[#allocation2 + $0x10] sm:$0xff] %vm41, %v188
  %203 = vst.msk [vmem:[#allocation2 + $0x18] sm:$0xff] %vm41, %v189
  %204 = vst.msk [vmem:[#allocation2 + $0x20] sm:$0xff] %vm41, %v190
  %205 = vst.msk [vmem:[#allocation2 + $0x28] sm:$0xff] %vm41, %v191
  %206 = vst.msk [vmem:[#allocation2 + $0x30] sm:$0xff] %vm41, %v192
  %207 = vst.msk [vmem:[#allocation2 + $0x38] sm:$0xff] %vm41, %v193
  %208 = vst.msk [vmem:[#allocation2 + $0x40] sm:$0xff] %vm41, %v194
  %209 = vst.msk [vmem:[#allocation2 + $0x48] sm:$0xff] %vm41, %v195
  %210 = vst.msk [vmem:[#allocation2 + $0x50] sm:$0xff] %vm41, %v196
  %211 = vst.msk [vmem:[#allocation2 + $0x58] sm:$0xff] %vm41, %v197
  %212 = vst.msk [vmem:[#allocation2 + $0x60] sm:$0xff] %vm41, %v198
  %213 = vst.msk [vmem:[#allocation2 + $0x68] sm:$0xff] %vm41, %v199
  %214 = vst.msk [vmem:[#allocation2 + $0x70] sm:$0xff] %vm41, %v180
  %215 = vst.msk [vmem:[#allocation2 + $0x78] sm:$0xff] %vm41, %v181
  %216 = vst.msk [vmem:[#allocation2 + $0x80] sm:$0xff] %vm41, %v182
  %217 = vst.msk [vmem:[#allocation2 + $0x88] sm:$0xff] %vm41, %v183
  %218 = vst.msk [vmem:[#allocation2 + $0x90] sm:$0xff] %vm41, %v184
  %219 = vst.msk [vmem:[#allocation2 + $0x98] sm:$0xff] %vm41, %v185
  %v220 = vld [vmem:[#allocation2] sm:$0xff]
  %v221 = vld [vmem:[#allocation2 + $0x8] sm:$0xff]
  %v222 = vld [vmem:[#allocation2 + $0x10] sm:$0xff]
  %v223 = vld [vmem:[#allocation2 + $0x18] sm:$0xff]
  %v224 = vld [vmem:[#allocation2 + $0x20] sm:$0xff]
  %v225 = vld [vmem:[#allocation2 + $0x28] sm:$0xff]
  %v226 = vld [vmem:[#allocation2 + $0x30] sm:$0xff]
  %v227 = vld [vmem:[#allocation2 + $0x38] sm:$0xff]
  %v228 = vld [vmem:[#allocation2 + $0x40] sm:$0xff]
  %v229 = vld [vmem:[#allocation2 + $0x48] sm:$0xff]
  %v230 = vld [vmem:[#allocation2 + $0x50] sm:$0xff]
  %v231 = vld [vmem:[#allocation2 + $0x58] sm:$0xff]
  %v232 = vld [vmem:[#allocation2 + $0x60] sm:$0xff]
  %v233 = vld [vmem:[#allocation2 + $0x68] sm:$0xff]
  %v234 = vld [vmem:[#allocation2 + $0x70] sm:$0xff]
  %v235 = vld [vmem:[#allocation2 + $0x78] sm:$0xff]
  %v236 = vld [vmem:[#allocation2 + $0x80] sm:$0xff]
  %v237 = vld [vmem:[#allocation2 + $0x88] sm:$0xff]
  %v238 = vld [vmem:[#allocation2 + $0x90] sm:$0xff]
  %v239 = vld [vmem:[#allocation2 + $0x98] sm:$0xff]
  %v240 = vld [vmem:[%s3] sm:$0xff]
  %v242 = vsel %vm41, %v220, 0
  %v245 = vsel %vm41, %v221, 0
  %v248 = vsel %vm41, %v222, 0
  %v251 = vsel %vm41, %v223, 0
  %v254 = vsel %vm41, %v224, 0
  %v257 = vsel %vm41, %v225, 0
  %v260 = vsel %vm41, %v226, 0
  %v263 = vsel %vm41, %v227, 0
  %v266 = vsel %vm41, %v228, 0
  %v269 = vsel %vm41, %v229, 0
  %v272 = vsel %vm41, %v230, 0
  %v275 = vsel %vm41, %v231, 0
  %v278 = vsel %vm41, %v232, 0
  %v281 = vsel %vm41, %v233, 0
  %v284 = vsel %vm41, %v234, 0
  %v287 = vsel %vm41, %v235, 0
  %v290 = vsel %vm41, %v236, 0
  %v293 = vsel %vm41, %v237, 0
  %v296 = vsel %vm41, %v238, 0
  %v299 = vsel %vm41, %v239, 0
  %301 = vmatpush.msra.mxu0 0.0
  %302 = vmatpush.msra.mxu0 0.0
  %303 = vmatpush.msra.mxu0 0.0
  %304 = vmatpush.msra.mxu0 0.0
  %305 = vmatpush.msra.mxu0 0.0
  %306 = vmatpush.msra.mxu0 0.0
  %307 = vmatpush.msra.mxu0 0.0
  %308 = vmatpush.msra.mxu0 0.0
  %309 = vmatpush.msra.mxu0 0.0
  %310 = vmatpush.msra.mxu0 0.0
  %311 = vmatpush.msra.mxu0 0.0
  %312 = vmatpush.msra.mxu0 0.0
  %313 = vmatpush.msra.mxu0 0.0
  %314 = vmatpush.msra.mxu0 0.0
  %315 = vmatpush.msra.mxu0 0.0
  %316 = vmatpush.msra.mxu0 %v240
  %317 = vmatmul.f32.gmra.mxu0 %v242
  %v318 = vpop.f32.mrf.mxu0
  %v319 = vadd.f32 0.0, %v318
  %320 = vmatmul.f32.gmra.mxu0 %v245
  %v321 = vpop.f32.mrf.mxu0
  %v322 = vadd.f32 0.0, %v321
  %323 = vmatmul.f32.gmra.mxu0 %v248
  %v324 = vpop.f32.mrf.mxu0
  %v325 = vadd.f32 0.0, %v324
  %326 = vmatmul.f32.gmra.mxu0 %v251
  %v327 = vpop.f32.mrf.mxu0
  %v328 = vadd.f32 0.0, %v327
  %329 = vmatmul.f32.gmra.mxu0 %v254
  %v330 = vpop.f32.mrf.mxu0
  %v331 = vadd.f32 0.0, %v330
  %332 = vmatmul.f32.gmra.mxu0 %v257
  %v333 = vpop.f32.mrf.mxu0
  %v334 = vadd.f32 0.0, %v333
  %335 = vmatmul.f32.gmra.mxu0 %v260
  %v336 = vpop.f32.mrf.mxu0
  %v337 = vadd.f32 0.0, %v336
  %338 = vmatmul.f32.gmra.mxu0 %v263
  %v339 = vpop.f32.mrf.mxu0
  %v340 = vadd.f32 0.0, %v339
  %341 = vmatmul.f32.gmra.mxu0 %v266
  %v342 = vpop.f32.mrf.mxu0
  %v343 = vadd.f32 0.0, %v342
  %344 = vmatmul.f32.gmra.mxu0 %v269
  %v345 = vpop.f32.mrf.mxu0
  %v346 = vadd.f32 0.0, %v345
  %347 = vmatmul.f32.gmra.mxu0 %v272
  %v348 = vpop.f32.mrf.mxu0
  %v349 = vadd.f32 0.0, %v348
  %350 = vmatmul.f32.gmra.mxu0 %v275
  %v351 = vpop.f32.mrf.mxu0
  %v352 = vadd.f32 0.0, %v351
  %353 = vmatmul.f32.gmra.mxu0 %v278
  %v354 = vpop.f32.mrf.mxu0
  %v355 = vadd.f32 0.0, %v354
  %356 = vmatmul.f32.gmra.mxu0 %v281
  %v357 = vpop.f32.mrf.mxu0
  %v358 = vadd.f32 0.0, %v357
  %359 = vmatmul.f32.gmra.mxu0 %v284
  %v360 = vpop.f32.mrf.mxu0
  %v361 = vadd.f32 0.0, %v360
  %362 = vmatmul.f32.gmra.mxu0 %v287
  %v363 = vpop.f32.mrf.mxu0
  %v364 = vadd.f32 0.0, %v363
  %365 = vmatmul.f32.gmra.mxu0 %v290
  %v366 = vpop.f32.mrf.mxu0
  %v367 = vadd.f32 0.0, %v366
  %368 = vmatmul.f32.gmra.mxu0 %v293
  %v369 = vpop.f32.mrf.mxu0
  %v370 = vadd.f32 0.0, %v369
  %371 = vmatmul.f32.gmra.mxu0 %v296
  %v372 = vpop.f32.mrf.mxu0
  %v373 = vadd.f32 0.0, %v372
  %374 = vmatmul.f32.gmra.mxu0 %v299
  %v375 = vpop.f32.mrf.mxu0
  %v376 = vadd.f32 0.0, %v375
  %377 = vdwg.mxu0
  %vm378 = vcmask 785408
  %379 = vst.msk [vmem:[%s4] sm:$0xff] %vm378, %v319
  %380 = vst.msk [vmem:[%s4 + $0x8] sm:$0xff] %vm378, %v322
  %381 = vst.msk [vmem:[%s4 + $0x10] sm:$0xff] %vm378, %v325
  %382 = vst.msk [vmem:[%s4 + $0x18] sm:$0xff] %vm378, %v328
  %383 = vst.msk [vmem:[%s4 + $0x20] sm:$0xff] %vm378, %v331
  %384 = vst.msk [vmem:[%s4 + $0x28] sm:$0xff] %vm378, %v334
  %385 = vst.msk [vmem:[%s4 + $0x30] sm:$0xff] %vm378, %v337
  %386 = vst.msk [vmem:[%s4 + $0x38] sm:$0xff] %vm378, %v340
  %387 = vst.msk [vmem:[%s4 + $0x40] sm:$0xff] %vm378, %v343
  %388 = vst.msk [vmem:[%s4 + $0x48] sm:$0xff] %vm378, %v346
  %389 = vst.msk [vmem:[%s4 + $0x50] sm:$0xff] %vm378, %v349
  %390 = vst.msk [vmem:[%s4 + $0x58] sm:$0xff] %vm378, %v352
  %391 = vst.msk [vmem:[%s4 + $0x60] sm:$0xff] %vm378, %v355
  %392 = vst.msk [vmem:[%s4 + $0x68] sm:$0xff] %vm378, %v358
  %393 = vst.msk [vmem:[%s4 + $0x70] sm:$0xff] %vm378, %v361
  %394 = vst.msk [vmem:[%s4 + $0x78] sm:$0xff] %vm378, %v364
  %395 = vst.msk [vmem:[%s4 + $0x80] sm:$0xff] %vm378, %v367
  %396 = vst.msk [vmem:[%s4 + $0x88] sm:$0xff] %vm378, %v370
  %397 = vst.msk [vmem:[%s4 + $0x90] sm:$0xff] %vm378, %v373
  %398 = vst.msk [vmem:[%s4 + $0x98] sm:$0xff] %vm378, %v376
  // Predicated region
  $region18: #{span_representation.1} parent=0 // pred_check
    _
  $region19: #{span_representation.1} parent=0 // pred_check_branch
    %400 = sbr.rel (0) target = $region21
  $region20: #{span_representation.1} parent=0 // pred_region
    _
  $region21: #{span_representation.1} parent=0 // pred_fallthru
    _
  // Predicated region
  $region22: #{span_representation.1} parent=0 // pred_check
    _
  $region23: #{span_representation.1} parent=0 // pred_check_branch
    %402 = sbr.rel (0) target = $region25
  $region24: #{span_representation.1} parent=0 // pred_region
    _
  $region25: #{span_representation.1} parent=0 // pred_fallthru
    _

</llo_original>
